<compile_context>
chip_gen: v6e
topology: v6e:2x2x1
jax: 0.10.0
libtpu: 0.0.40
codegen_flags: <defaults>
</compile_context>

<pallas_src>
import functools

import jax
import jax.numpy as jnp
from jax.experimental import pallas as pl
from jax.experimental.pallas import tpu as pltpu


def _round_up(n, m):
    return ((n + m - 1) // m) * m


def _resnet1_kernel(x_ref, win_ref, bin_ref, wh_ref, bh_ref, wout_ref,
                    bout_ref, o_ref, *, depth):
    # linearIn: bf16 operands, f32 accumulation on the MXU.
    x = jnp.dot(x_ref[...].astype(jnp.bfloat16), win_ref[...],
                preferred_element_type=jnp.float32) + bin_ref[...]

    # Residual MLP stack: x = relu(x @ W_d + b_d) + x   (elementwise in f32).
    # Static unroll is fine at small depth; switch to lax.fori_loop with
    # dynamic wh_ref[d] indexing if depth_d grows to ~16+.
    for d in range(depth):
        h = jnp.dot(x.astype(jnp.bfloat16), wh_ref[d],
                    preferred_element_type=jnp.float32) + bh_ref[d]
        x = jnp.maximum(h, 0.0) + x

    # linearOut + relu, stored directly at the true width K (masked vst at a
    # few lanes is negligible; avoids a 32x-padded HBM writeback).
    y = jnp.dot(x.astype(jnp.bfloat16), wout_ref[...],
                preferred_element_type=jnp.float32) + bout_ref[...]
    o_ref[...] = jnp.maximum(y, 0.0).astype(o_ref.dtype)


def resnet1_forward(x, params, *, depth_d, block_b=4096):
    """Forward pass.

    x: (B, Ns*K*2) float32.
    params: f32 weights in PyTorch Linear layout, pre-transposed to (in, out).
    Returns (B, K) float32.
    """
    B, in_dim = x.shape
    K = params["w_out"].shape[1]

    # Batch tile: as large as block_b, but capped near B/2 so the parallel
    # batch axis has >= 2 grid steps whenever B allows (v7x has 2 TCs).
    tb = max(8, min(block_b, _round_up(pl.cdiv(B, 2), 8)))
    grid_b = pl.cdiv(B, tb)

    # bf16 weights (half the resident VMEM / DMA bytes); biases stay f32.
    w_in = params["w_in"].astype(jnp.bfloat16)
    w_h = params["w_h"].astype(jnp.bfloat16)
    w_out = params["w_out"].astype(jnp.bfloat16)
    b_in = params["b_in"]
    b_h = params["b_h"]
    b_out = params["b_out"]

    # TODO(synk): if width_d/depth_d are scaled up past scoped VMEM, move the
    # depth loop onto the grid and pipeline one w_h layer per step instead of
    # keeping the whole stack resident.

    resident = lambda a: pl.BlockSpec(a.shape,
                                      lambda i: tuple(0 for _ in a.shape))
    kernel = functools.partial(_resnet1_kernel, depth=depth_d)

    out = pl.pallas_call(
        kernel,
        out_shape=jax.ShapeDtypeStruct((B, K), jnp.float32),
        grid_spec=pl.GridSpec(
            grid=(grid_b,),
            in_specs=[
                pl.BlockSpec((tb, in_dim), lambda i: (i, 0)),   # x tiles
                resident(w_in),
                resident(b_in),
                resident(w_h),
                resident(b_h),
                resident(w_out),
                resident(b_out),
            ],
            out_specs=pl.BlockSpec((tb, K), lambda i: (i, 0)),
        ),
        compiler_params=pltpu.CompilerParams(
            dimension_semantics=("parallel",),
            vmem_limit_bytes=32 * 1024 * 1024),
    )(x, w_in, b_in, w_h, b_h, w_out, b_out)

    return out


def init_params(key, in_dim, width_d, depth_d, K):
    """Deterministic synthetic parameters (PyTorch Linear init, pre-transposed)."""
    ks = jax.random.split(key, 2 * depth_d + 4)
    scale_in = 1.0 / jnp.sqrt(in_dim)
    scale_w = 1.0 / jnp.sqrt(width_d)
    w_in = jax.random.uniform(ks[0], (in_dim, width_d), jnp.float32,
                              -scale_in, scale_in)
    b_in = jax.random.uniform(ks[1], (1, width_d), jnp.float32,
                              -scale_in, scale_in)
    w_h = jnp.stack([
        jax.random.uniform(ks[2 + 2 * d], (width_d, width_d), jnp.float32,
                           -scale_w, scale_w) for d in range(depth_d)
    ])
    b_h = jnp.stack([
        jax.random.uniform(ks[3 + 2 * d], (1, width_d), jnp.float32,
                           -scale_w, scale_w) for d in range(depth_d)
    ])
    w_out = jax.random.uniform(ks[-2], (width_d, K), jnp.float32,
                               -scale_w, scale_w)
    b_out = jax.random.uniform(ks[-1], (1, K), jnp.float32, -scale_w, scale_w)
    return {"w_in": w_in, "b_in": b_in, "w_h": w_h, "b_h": b_h,
            "w_out": w_out, "b_out": b_out}


def reference_forward(x, params, depth_d, *, cast=jnp.float32):
    """Pure-JAX reference. `cast` lets us mimic the kernel's bf16 operands."""
    c = lambda a: a.astype(cast)
    y = jnp.dot(c(x), c(params["w_in"]),
                preferred_element_type=jnp.float32) + params["b_in"]
    for d in range(depth_d):
        h = jnp.dot(c(y), c(params["w_h"][d]),
                    preferred_element_type=jnp.float32) + params["b_h"][d]
        y = jnp.maximum(h, 0.0) + y
    y = jnp.dot(c(y), c(params["w_out"]),
                preferred_element_type=jnp.float32) + params["b_out"]
    return jnp.maximum(y, 0.0)


if __name__ == "__main__":
    # Small shapes consistent with the module: args.Ns=4, args.K=4,
    # args.width_d=32, args.depth_d=3, batch=8.
    Ns, K, width_d, depth_d = 4, 4, 32, 3
    B = 8
    in_dim = Ns * K * 2  # 32

    key = jax.random.PRNGKey(0)
    kx, kp = jax.random.split(key)
    x = jax.random.normal(kx, (B, in_dim), jnp.float32)
    params = init_params(kp, in_dim, width_d, depth_d, K)

    out = jax.block_until_ready(resnet1_forward(x, params, depth_d=depth_d))
    assert out.shape == (B, K)

    # Tight check vs a reference that uses the same bf16 operands / f32 accum.
    ref_bf16 = reference_forward(x, params, depth_d, cast=jnp.bfloat16)
    assert jnp.allclose(out, ref_bf16, atol=1e-3, rtol=1e-3), \
        "mismatch vs bf16-operand reference"

    # Loose sanity check vs the pure-f32 module semantics.
    ref_f32 = reference_forward(x, params, depth_d, cast=jnp.float32)
    assert jnp.allclose(out, ref_f32, atol=1e-1, rtol=1e-1), \
        "mismatch vs f32 reference"

    print("KERNEL_OK")
</pallas_src>

<mosaic_0001>
module attributes {stable_mosaic.version = 11 : i64} {
  func.func @_resnet1_kernel(%arg0: i32, %arg1: memref<8x32xf32, #tpu.memory_space<vmem>>, %arg2: memref<32x32xbf16, #tpu.memory_space<vmem>>, %arg3: memref<1x32xf32, #tpu.memory_space<vmem>>, %arg4: memref<3x32x32xbf16, #tpu.memory_space<vmem>>, %arg5: memref<3x1x32xf32, #tpu.memory_space<vmem>>, %arg6: memref<32x4xbf16, #tpu.memory_space<vmem>>, %arg7: memref<1x4xf32, #tpu.memory_space<vmem>>, %arg8: memref<8x4xf32, #tpu.memory_space<vmem>>) attributes {dimension_semantics = [#tpu.dimension_semantics<parallel>], iteration_bounds = array<i64: 1>, scalar_prefetch = 0 : i64, scratch_operands = 0 : i64, tpu.core_type = #tpu.core_type<tc>, window_params = [{transform_indices = @transform_0, window_bounds = array<i64: 8, 32>}, {pipeline_mode = #tpu.pipeline_mode<synchronous>, transform_indices = @transform_1, window_bounds = array<i64: 32, 32>}, {pipeline_mode = #tpu.pipeline_mode<synchronous>, transform_indices = @transform_2, window_bounds = array<i64: 1, 32>}, {pipeline_mode = #tpu.pipeline_mode<synchronous>, transform_indices = @transform_3, window_bounds = array<i64: 3, 32, 32>}, {pipeline_mode = #tpu.pipeline_mode<synchronous>, transform_indices = @transform_4, window_bounds = array<i64: 3, 1, 32>}, {pipeline_mode = #tpu.pipeline_mode<synchronous>, transform_indices = @transform_5, window_bounds = array<i64: 32, 4>}, {pipeline_mode = #tpu.pipeline_mode<synchronous>, transform_indices = @transform_6, window_bounds = array<i64: 1, 4>}, {transform_indices = @transform_7, window_bounds = array<i64: 8, 4>}]} {
    %c0 = arith.constant 0 : index
    %c0_0 = arith.constant 0 : index
    %0 = vector.load %arg1[%c0, %c0_0] : memref<8x32xf32, #tpu.memory_space<vmem>>, vector<8x32xf32>
    %1 = arith.truncf %0 : vector<8x32xf32> to vector<8x32xbf16>
    %c0_1 = arith.constant 0 : index
    %c0_2 = arith.constant 0 : index
    %2 = vector.load %arg2[%c0_1, %c0_2] : memref<32x32xbf16, #tpu.memory_space<vmem>>, vector<32x32xbf16>
    %cst = arith.constant dense<0.000000e+00> : vector<8x32xf32>
    %3 = tpu.matmul %1, %2, %cst {dimension_numbers = #tpu.dot_dimension_numbers<[1], [0], [0], [1], [0, 0, 1, 1], [], []>} : vector<8x32xbf16>, vector<32x32xbf16>, vector<8x32xf32> -> vector<8x32xf32>
    %c0_3 = arith.constant 0 : index
    %c0_4 = arith.constant 0 : index
    %4 = vector.load %arg3[%c0_3, %c0_4] : memref<1x32xf32, #tpu.memory_space<vmem>>, vector<1x32xf32>
    %5 = vector.broadcast %4 : vector<1x32xf32> to vector<8x32xf32>
    %6 = arith.addf %3, %5 : vector<8x32xf32>
    %7 = arith.truncf %6 : vector<8x32xf32> to vector<8x32xbf16>
    %c0_5 = arith.constant 0 : index
    %c0_6 = arith.constant 0 : index
    %c0_7 = arith.constant 0 : index
    %8 = vector.load %arg4[%c0_5, %c0_6, %c0_7] : memref<3x32x32xbf16, #tpu.memory_space<vmem>>, vector<1x32x32xbf16>
    %9 = vector.shape_cast %8 : vector<1x32x32xbf16> to vector<32x32xbf16>
    %cst_8 = arith.constant dense<0.000000e+00> : vector<8x32xf32>
    %10 = tpu.matmul %7, %9, %cst_8 {dimension_numbers = #tpu.dot_dimension_numbers<[1], [0], [0], [1], [0, 0, 1, 1], [], []>} : vector<8x32xbf16>, vector<32x32xbf16>, vector<8x32xf32> -> vector<8x32xf32>
    %c0_9 = arith.constant 0 : index
    %c0_10 = arith.constant 0 : index
    %c0_11 = arith.constant 0 : index
    %11 = vector.load %arg5[%c0_9, %c0_10, %c0_11] : memref<3x1x32xf32, #tpu.memory_space<vmem>>, vector<1x1x32xf32>
    %12 = vector.shape_cast %11 : vector<1x1x32xf32> to vector<1x32xf32>
    %13 = vector.broadcast %12 : vector<1x32xf32> to vector<8x32xf32>
    %14 = arith.addf %10, %13 : vector<8x32xf32>
    %cst_12 = arith.constant 0.000000e+00 : f32
    %15 = vector.broadcast %cst_12 : f32 to vector<8x32xf32>
    %16 = arith.maximumf %14, %15 : vector<8x32xf32>
    %17 = arith.addf %16, %6 : vector<8x32xf32>
    %18 = arith.truncf %17 : vector<8x32xf32> to vector<8x32xbf16>
    %c1 = arith.constant 1 : index
    %c0_13 = arith.constant 0 : index
    %c0_14 = arith.constant 0 : index
    %19 = vector.load %arg4[%c1, %c0_13, %c0_14] : memref<3x32x32xbf16, #tpu.memory_space<vmem>>, vector<1x32x32xbf16>
    %20 = vector.shape_cast %19 : vector<1x32x32xbf16> to vector<32x32xbf16>
    %cst_15 = arith.constant dense<0.000000e+00> : vector<8x32xf32>
    %21 = tpu.matmul %18, %20, %cst_15 {dimension_numbers = #tpu.dot_dimension_numbers<[1], [0], [0], [1], [0, 0, 1, 1], [], []>} : vector<8x32xbf16>, vector<32x32xbf16>, vector<8x32xf32> -> vector<8x32xf32>
    %c1_16 = arith.constant 1 : index
    %c0_17 = arith.constant 0 : index
    %c0_18 = arith.constant 0 : index
    %22 = vector.load %arg5[%c1_16, %c0_17, %c0_18] : memref<3x1x32xf32, #tpu.memory_space<vmem>>, vector<1x1x32xf32>
    %23 = vector.shape_cast %22 : vector<1x1x32xf32> to vector<1x32xf32>
    %24 = vector.broadcast %23 : vector<1x32xf32> to vector<8x32xf32>
    %25 = arith.addf %21, %24 : vector<8x32xf32>
    %cst_19 = arith.constant 0.000000e+00 : f32
    %26 = vector.broadcast %cst_19 : f32 to vector<8x32xf32>
    %27 = arith.maximumf %25, %26 : vector<8x32xf32>
    %28 = arith.addf %27, %17 : vector<8x32xf32>
    %29 = arith.truncf %28 : vector<8x32xf32> to vector<8x32xbf16>
    %c2 = arith.constant 2 : index
    %c0_20 = arith.constant 0 : index
    %c0_21 = arith.constant 0 : index
    %30 = vector.load %arg4[%c2, %c0_20, %c0_21] : memref<3x32x32xbf16, #tpu.memory_space<vmem>>, vector<1x32x32xbf16>
    %31 = vector.shape_cast %30 : vector<1x32x32xbf16> to vector<32x32xbf16>
    %cst_22 = arith.constant dense<0.000000e+00> : vector<8x32xf32>
    %32 = tpu.matmul %29, %31, %cst_22 {dimension_numbers = #tpu.dot_dimension_numbers<[1], [0], [0], [1], [0, 0, 1, 1], [], []>} : vector<8x32xbf16>, vector<32x32xbf16>, vector<8x32xf32> -> vector<8x32xf32>
    %c2_23 = arith.constant 2 : index
    %c0_24 = arith.constant 0 : index
    %c0_25 = arith.constant 0 : index
    %33 = vector.load %arg5[%c2_23, %c0_24, %c0_25] : memref<3x1x32xf32, #tpu.memory_space<vmem>>, vector<1x1x32xf32>
    %34 = vector.shape_cast %33 : vector<1x1x32xf32> to vector<1x32xf32>
    %35 = vector.broadcast %34 : vector<1x32xf32> to vector<8x32xf32>
    %36 = arith.addf %32, %35 : vector<8x32xf32>
    %cst_26 = arith.constant 0.000000e+00 : f32
    %37 = vector.broadcast %cst_26 : f32 to vector<8x32xf32>
    %38 = arith.maximumf %36, %37 : vector<8x32xf32>
    %39 = arith.addf %38, %28 : vector<8x32xf32>
    %40 = arith.truncf %39 : vector<8x32xf32> to vector<8x32xbf16>
    %c0_27 = arith.constant 0 : index
    %c0_28 = arith.constant 0 : index
    %41 = vector.load %arg6[%c0_27, %c0_28] : memref<32x4xbf16, #tpu.memory_space<vmem>>, vector<32x4xbf16>
    %cst_29 = arith.constant dense<0.000000e+00> : vector<8x4xf32>
    %42 = tpu.matmul %40, %41, %cst_29 {dimension_numbers = #tpu.dot_dimension_numbers<[1], [0], [0], [1], [0, 0, 1, 1], [], []>} : vector<8x32xbf16>, vector<32x4xbf16>, vector<8x4xf32> -> vector<8x4xf32>
    %c0_30 = arith.constant 0 : index
    %c0_31 = arith.constant 0 : index
    %43 = vector.load %arg7[%c0_30, %c0_31] : memref<1x4xf32, #tpu.memory_space<vmem>>, vector<1x4xf32>
    %44 = vector.broadcast %43 : vector<1x4xf32> to vector<8x4xf32>
    %45 = arith.addf %42, %44 : vector<8x4xf32>
    %cst_32 = arith.constant 0.000000e+00 : f32
    %46 = vector.broadcast %cst_32 : f32 to vector<8x4xf32>
    %47 = arith.maximumf %45, %46 : vector<8x4xf32>
    %c0_33 = arith.constant 0 : index
    %c0_34 = arith.constant 0 : index
    %48 = vector.load %arg8[%c0_33, %c0_34] : memref<8x4xf32, #tpu.memory_space<vmem>>, vector<8x4xf32>
    tpu.vector_store %arg8[%c0_33, %c0_34], %47 {strides = array<i32>} : memref<8x4xf32, #tpu.memory_space<vmem>>, vector<8x4xf32>,
    return
  }
  func.func @transform_0(%arg0: i32) -> (i32, i32) {
    %c0_i32 = arith.constant 0 : i32
    %c0_i32_0 = arith.constant 0 : i32
    return %arg0, %c0_i32 : i32, i32
  }
  func.func @transform_1(%arg0: i32) -> (i32, i32) {
    %c0_i32 = arith.constant 0 : i32
    %c0_i32_0 = arith.constant 0 : i32
    %c0_i32_1 = arith.constant 0 : i32
    return %c0_i32, %c0_i32_0 : i32, i32
  }
  func.func @transform_2(%arg0: i32) -> (i32, i32) {
    %c0_i32 = arith.constant 0 : i32
    %c0_i32_0 = arith.constant 0 : i32
    %c0_i32_1 = arith.constant 0 : i32
    return %c0_i32, %c0_i32_0 : i32, i32
  }
  func.func @transform_3(%arg0: i32) -> (i32, i32, i32) {
    %c0_i32 = arith.constant 0 : i32
    %c0_i32_0 = arith.constant 0 : i32
    %c0_i32_1 = arith.constant 0 : i32
    %c0_i32_2 = arith.constant 0 : i32
    return %c0_i32, %c0_i32_0, %c0_i32_1 : i32, i32, i32
  }
  func.func @transform_4(%arg0: i32) -> (i32, i32, i32) {
    %c0_i32 = arith.constant 0 : i32
    %c0_i32_0 = arith.constant 0 : i32
    %c0_i32_1 = arith.constant 0 : i32
    %c0_i32_2 = arith.constant 0 : i32
    return %c0_i32, %c0_i32_0, %c0_i32_1 : i32, i32, i32
  }
  func.func @transform_5(%arg0: i32) -> (i32, i32) {
    %c0_i32 = arith.constant 0 : i32
    %c0_i32_0 = arith.constant 0 : i32
    %c0_i32_1 = arith.constant 0 : i32
    return %c0_i32, %c0_i32_0 : i32, i32
  }
  func.func @transform_6(%arg0: i32) -> (i32, i32) {
    %c0_i32 = arith.constant 0 : i32
    %c0_i32_0 = arith.constant 0 : i32
    %c0_i32_1 = arith.constant 0 : i32
    return %c0_i32, %c0_i32_0 : i32, i32
  }
  func.func @transform_7(%arg0: i32) -> (i32, i32) {
    %c0_i32 = arith.constant 0 : i32
    %c0_i32_0 = arith.constant 0 : i32
    return %arg0, %c0_i32 : i32, i32
  }
}

</mosaic_0001>

<llo_original>
// kernel: tpu_custom_call.1
$region0: #{tpu_custom_call.1}
  #allocation0 [shape = 'u32[]', space=smem, size = 0x4, offset = 0x4, fixed_abs, tag = 'smem constant byte address 0x4 - core index']
  #allocation1 [shape = 'u32[144,128]{1,0:T(1,128)}', space=vmem, size = 0x12000, scoped, tag = 'internal scratch']
  %s0 = inlined_call_operand.hbm [shape: f32[8,32], index: 0, kind: input, shape index: {}]
  %s1 = inlined_call_operand.vmem [shape: bf16[32,32], index: 1, kind: input, shape index: {}]
  %s2 = inlined_call_operand.hbm [shape: f32[1,32], index: 2, kind: input, shape index: {}]
  %s3 = inlined_call_operand.hbm [shape: bf16[3,32,32], index: 3, kind: input, shape index: {}]
  %s4 = inlined_call_operand.vmem [shape: f32[3,1,32], index: 4, kind: input, shape index: {}]
  %s5 = inlined_call_operand.vmem [shape: bf16[32,4], index: 5, kind: input, shape index: {}]
  %s6 = inlined_call_operand.vmem [shape: f32[1,4], index: 6, kind: input, shape index: {}]
  %s7 = inlined_call_operand.vmem [shape: f32[8,4], index: 7, kind: output, shape index: {}]
  %s8 = sld [smem:[#allocation0]]
  $region50: #{tpu_custom_call.1} parent=0
    _
  %s10 = ssub.s32 1, %s8
  %s11 = scalar_select 0, %s10, %s8
  $region1: #{tpu_custom_call.1} parent=0
    #allocation2 [shape = 'u8[4096]{0}', space=vmem, size = 0x1000, scoped, tag = 'input window, operand 0, single buffered']
    #allocation3 [shape = 's32[1]{0}', space=sflag, size = 0x4, scoped, tag = 'scoped memory for tpu_custom_call.1']
    #allocation4 [shape = 'u8[512]{0}', space=vmem, size = 0x400, scoped, tag = 'input window, operand 2, single buffered']
    #allocation5 [shape = 's32[1]{0}', space=sflag, size = 0x4, scoped, tag = 'scoped memory for tpu_custom_call.1']
    #allocation6 [shape = 'u8[24576]{0}', space=vmem, size = 0x6000, scoped, tag = 'input window, operand 3, single buffered']
    %12 = vsyncpa [#allocation3], 0
    %13 = vsyncpa [#allocation5], 0
    // Predicated region
    $region2: #{tpu_custom_call.1} parent=1 // pred_check
      _
    $region3: #{tpu_custom_call.1} parent=1 // pred_check_branch
      %15 = sbr.rel (0) target = $region5
    $region4: #{tpu_custom_call.1} parent=1 // pred_region
      %s17 = ssub.s32 128, 128
      %18 = vsyncadd [#allocation3], %s17
      %s20 = sshll.u32 [#allocation2], 4
      %s21 = int_to_ptr.vmem [resolvable:$true] %s20
      %23 = dma.hbm_to_vmem [thread:$0]  %s0, 128, %s21, [#allocation3]
    $region5: #{tpu_custom_call.1} parent=1 // pred_fallthru
      _
    // Predicated region
    $region6: #{tpu_custom_call.1} parent=1 // pred_check
      _
    $region7: #{tpu_custom_call.1} parent=1 // pred_check_branch
      %25 = sbr.rel (0) target = $region9
    $region8: #{tpu_custom_call.1} parent=1 // pred_region
      _
    $region9: #{tpu_custom_call.1} parent=1 // pred_fallthru
      _
    // Predicated region
    $region10: #{tpu_custom_call.1} parent=1 // pred_check
      _
    $region11: #{tpu_custom_call.1} parent=1 // pred_check_branch
      %27 = sbr.rel (0) target = $region13
    $region12: #{tpu_custom_call.1} parent=1 // pred_region
      %s29 = ssub.s32 16, 16
      %30 = vsyncadd [#allocation5], %s29
      %s32 = sshll.u32 [#allocation4], 4
      %s33 = int_to_ptr.vmem [resolvable:$true] %s32
      %35 = dma.hbm_to_vmem [thread:$0]  %s2, 16, %s33, [#allocation5]
    $region13: #{tpu_custom_call.1} parent=1 // pred_fallthru
      _
    // Predicated region
    $region14: #{tpu_custom_call.1} parent=1 // pred_check
      _
    $region15: #{tpu_custom_call.1} parent=1 // pred_check_branch
      %37 = sbr.rel (0) target = $region17
    $region16: #{tpu_custom_call.1} parent=1 // pred_region
      %s39 = ssub.s32 768, 768
      %40 = vsyncadd [#allocation5], %s39
      %s41 = sshll.u32 [#allocation6], 4
      %s42 = int_to_ptr.vmem [resolvable:$true] %s41
      %47 = dma.hbm_to_vmem [thread:$0]  %s3, 768, %s42, [#allocation5], 64, 64, 4
    $region17: #{tpu_custom_call.1} parent=1 // pred_fallthru
      _
    // Predicated region
    $region18: #{tpu_custom_call.1} parent=1 // pred_check
      _
    $region19: #{tpu_custom_call.1} parent=1 // pred_check_branch
      %49 = sbr.rel (0) target = $region21
    $region20: #{tpu_custom_call.1} parent=1 // pred_region
      _
    $region21: #{tpu_custom_call.1} parent=1 // pred_fallthru
      _
    // Predicated region
    $region22: #{tpu_custom_call.1} parent=1 // pred_check
      _
    $region23: #{tpu_custom_call.1} parent=1 // pred_check_branch
      %51 = sbr.rel (0) target = $region25
    $region24: #{tpu_custom_call.1} parent=1 // pred_region
      _
    $region25: #{tpu_custom_call.1} parent=1 // pred_fallthru
      _
    // Predicated region
    $region26: #{tpu_custom_call.1} parent=1 // pred_check
      _
    $region27: #{tpu_custom_call.1} parent=1 // pred_check_branch
      %53 = sbr.rel (0) target = $region29
    $region28: #{tpu_custom_call.1} parent=1 // pred_region
      _
    $region29: #{tpu_custom_call.1} parent=1 // pred_fallthru
      _
    // Predicated region
    $region30: #{tpu_custom_call.1} parent=1 // pred_check
      _
    $region31: #{tpu_custom_call.1} parent=1 // pred_check_branch
      %55 = sbr.rel (0) target = $region33
    $region32: #{tpu_custom_call.1} parent=1 // pred_region
      %56 = dma.done [#allocation3], 128
    $region33: #{tpu_custom_call.1} parent=1 // pred_fallthru
      _
    // Predicated region
    $region34: #{tpu_custom_call.1} parent=1 // pred_check
      _
    $region35: #{tpu_custom_call.1} parent=1 // pred_check_branch
      %58 = sbr.rel (0) target = $region37
    $region36: #{tpu_custom_call.1} parent=1 // pred_region
      %59 = dma.done [#allocation5], 16
    $region37: #{tpu_custom_call.1} parent=1 // pred_fallthru
      _
    // Predicated region
    $region38: #{tpu_custom_call.1} parent=1 // pred_check
      _
    $region39: #{tpu_custom_call.1} parent=1 // pred_check_branch
      %61 = sbr.rel (0) target = $region41
    $region40: #{tpu_custom_call.1} parent=1 // pred_region
      %62 = dma.done [#allocation5], 768
    $region41: #{tpu_custom_call.1} parent=1 // pred_fallthru
      _
    %v64 = vld [vmem:[#allocation2] sm:$0xff]
    %v65 = vpack.c.bf16 %v64, %v64
    %v66 = vld [vmem:[%s1] sm:$0xf]
    %v67 = vld [vmem:[%s1 + $0x4] sm:$0xf]
    %v68 = vld [vmem:[%s1 + $0x8] sm:$0xf]
    %v69 = vld [vmem:[%s1 + $0xc] sm:$0xf]
    %v70 = vld [vmem:[#allocation4] sm:$0x1]
    %v72 = vlaneseq
    %v73 = vshrl.u32 %v72, 7
    %v74 = vsub.s32 0, %v73
    %v75 = vrot.slane %v70, %v74
    %v81 = vunpack.c.l.b16 %v66
    %v82 = vunpack.c.l.b16 %v67
    %v83 = vunpack.c.l.b16 %v68
    %v84 = vunpack.c.l.b16 %v69
    %v85 = vpack.c.b16 %v82, %v81
    %v86 = vpack.c.b16 %v84, %v83
    %vm89 = vcmask 261120
    %v91 = vsel %vm89, %v65, 0
    %93 = vmatprep.subr.bf16.mxu0 0
    %94 = vmatpush1.bf16.msra.mxu0 0
    %95 = vmatprep.subr.bf16.mxu0 0
    %96 = vmatpush1.bf16.msra.mxu0 0
    %97 = vmatprep.subr.bf16.mxu0 0
    %98 = vmatpush1.bf16.msra.mxu0 0
    %99 = vmatprep.subr.bf16.mxu0 0
    %100 = vmatpush1.bf16.msra.mxu0 0
    %101 = vmatprep.subr.bf16.mxu0 0
    %102 = vmatpush1.bf16.msra.mxu0 0
    %103 = vmatprep.subr.bf16.mxu0 0
    %104 = vmatpush1.bf16.msra.mxu0 0
    %105 = vmatprep.subr.bf16.mxu0 0
    %106 = vmatpush1.bf16.msra.mxu0 %v86
    %107 = vmatprep.subr.bf16.mxu0 0
    %108 = vmatpush1.bf16.msra.mxu0 %v85
    %109 = vmatprep.subr.bf16.mxu0 0
    %110 = vmatpush2.bf16.msra.mxu0 0
    %111 = vmatprep.subr.bf16.mxu0 0
    %112 = vmatpush2.bf16.msra.mxu0 0
    %113 = vmatprep.subr.bf16.mxu0 0
    %114 = vmatpush2.bf16.msra.mxu0 0
    %115 = vmatprep.subr.bf16.mxu0 0
    %116 = vmatpush2.bf16.msra.mxu0 0
    %117 = vmatprep.subr.bf16.mxu0 0
    %118 = vmatpush2.bf16.msra.mxu0 0
    %119 = vmatprep.subr.bf16.mxu0 0
    %120 = vmatpush2.bf16.msra.mxu0 0
    %121 = vmatprep.subr.bf16.mxu0 0
    %122 = vmatpush2.bf16.msra.mxu0 0
    %123 = vmatprep.subr.bf16.mxu0 0
    %124 = vmatpush2.bf16.msra.mxu0 0
    %125 = vmatprep.mubr.bf16.mxu0 0
    %126 = vmatmul.mubr.bf16.gmra.mxu0 %v91
    %v127 = vpop.f32.mrf.mxu0
    %v128 = vadd.f32 %v75, %v127
    %v129 = vpop.f32.mrf.mxu0
    %v130 = vpop.f32.mrf.mxu0
    %v131 = vpop.f32.mrf.mxu0
    %132 = vdwg.mxu0
    %v133 = vpack.c.bf16 %v128, %v128
    %v134 = vld [vmem:[#allocation6] sm:$0xf]
    %v135 = vld [vmem:[#allocation6 + $0x4] sm:$0xf]
    %v136 = vld [vmem:[#allocation6 + $0x8] sm:$0xf]
    %v137 = vld [vmem:[#allocation6 + $0xc] sm:$0xf]
    %v138 = vld [vmem:[%s4] sm:$0x1]
    %v140 = vlaneseq
    %v141 = vshrl.u32 %v140, 7
    %v142 = vsub.s32 0, %v141
    %v143 = vrot.slane %v138, %v142
    %v149 = vunpack.c.l.b16 %v134
    %v150 = vunpack.c.l.b16 %v135
    %v151 = vunpack.c.l.b16 %v136
    %v152 = vunpack.c.l.b16 %v137
    %v153 = vpack.c.b16 %v150, %v149
    %v154 = vpack.c.b16 %v152, %v151
    %v158 = vsel %vm89, %v133, 0
    %160 = vmatprep.subr.bf16.mxu0 0
    %161 = vmatpush1.bf16.msra.mxu0 0
    %162 = vmatprep.subr.bf16.mxu0 0
    %163 = vmatpush1.bf16.msra.mxu0 0
    %164 = vmatprep.subr.bf16.mxu0 0
    %165 = vmatpush1.bf16.msra.mxu0 0
    %166 = vmatprep.subr.bf16.mxu0 0
    %167 = vmatpush1.bf16.msra.mxu0 0
    %168 = vmatprep.subr.bf16.mxu0 0
    %169 = vmatpush1.bf16.msra.mxu0 0
    %170 = vmatprep.subr.bf16.mxu0 0
    %171 = vmatpush1.bf16.msra.mxu0 0
    %172 = vmatprep.subr.bf16.mxu0 0
    %173 = vmatpush1.bf16.msra.mxu0 %v154
    %174 = vmatprep.subr.bf16.mxu0 0
    %175 = vmatpush1.bf16.msra.mxu0 %v153
    %176 = vmatprep.subr.bf16.mxu0 0
    %177 = vmatpush2.bf16.msra.mxu0 0
    %178 = vmatprep.subr.bf16.mxu0 0
    %179 = vmatpush2.bf16.msra.mxu0 0
    %180 = vmatprep.subr.bf16.mxu0 0
    %181 = vmatpush2.bf16.msra.mxu0 0
    %182 = vmatprep.subr.bf16.mxu0 0
    %183 = vmatpush2.bf16.msra.mxu0 0
    %184 = vmatprep.subr.bf16.mxu0 0
    %185 = vmatpush2.bf16.msra.mxu0 0
    %186 = vmatprep.subr.bf16.mxu0 0
    %187 = vmatpush2.bf16.msra.mxu0 0
    %188 = vmatprep.subr.bf16.mxu0 0
    %189 = vmatpush2.bf16.msra.mxu0 0
    %190 = vmatprep.subr.bf16.mxu0 0
    %191 = vmatpush2.bf16.msra.mxu0 0
    %192 = vmatprep.mubr.bf16.mxu0 0
    %193 = vmatmul.mubr.bf16.gmra.mxu0 %v158
    %v194 = vpop.f32.mrf.mxu0
    %v195 = vadd.f32 %v143, %v194
    %v196 = vpop.f32.mrf.mxu0
    %v197 = vpop.f32.mrf.mxu0
    %v198 = vpop.f32.mrf.mxu0
    %199 = vdwg.mxu0
    %v200 = vmax.f32 %v195, 0.0
    %v201 = vadd.f32 %v200, %v128
    %v202 = vpack.c.bf16 %v201, %v201
    %s203 = scalar_lea.vmem [#allocation6], 16
    %v204 = vld [vmem:[%s203] sm:$0xf]
    %v205 = vld [vmem:[%s203 + $0x4] sm:$0xf]
    %v206 = vld [vmem:[%s203 + $0x8] sm:$0xf]
    %v207 = vld [vmem:[%s203 + $0xc] sm:$0xf]
    %s208 = scalar_lea.vmem %s4, 1
    %v209 = vld [vmem:[%s208] sm:$0x1]
    %v211 = vlaneseq
    %v212 = vshrl.u32 %v211, 7
    %v213 = vsub.s32 0, %v212
    %v214 = vrot.slane %v209, %v213
    %v220 = vunpack.c.l.b16 %v204
    %v221 = vunpack.c.l.b16 %v205
    %v222 = vunpack.c.l.b16 %v206
    %v223 = vunpack.c.l.b16 %v207
    %v224 = vpack.c.b16 %v221, %v220
    %v225 = vpack.c.b16 %v223, %v222
    %v229 = vsel %vm89, %v202, 0
    %231 = vmatprep.subr.bf16.mxu0 0
    %232 = vmatpush1.bf16.msra.mxu0 0
    %233 = vmatprep.subr.bf16.mxu0 0
    %234 = vmatpush1.bf16.msra.mxu0 0
    %235 = vmatprep.subr.bf16.mxu0 0
    %236 = vmatpush1.bf16.msra.mxu0 0
    %237 = vmatprep.subr.bf16.mxu0 0
    %238 = vmatpush1.bf16.msra.mxu0 0
    %239 = vmatprep.subr.bf16.mxu0 0
    %240 = vmatpush1.bf16.msra.mxu0 0
    %241 = vmatprep.subr.bf16.mxu0 0
    %242 = vmatpush1.bf16.msra.mxu0 0
    %243 = vmatprep.subr.bf16.mxu0 0
    %244 = vmatpush1.bf16.msra.mxu0 %v225
    %245 = vmatprep.subr.bf16.mxu0 0
    %246 = vmatpush1.bf16.msra.mxu0 %v224
    %247 = vmatprep.subr.bf16.mxu0 0
    %248 = vmatpush2.bf16.msra.mxu0 0
    %249 = vmatprep.subr.bf16.mxu0 0
    %250 = vmatpush2.bf16.msra.mxu0 0
    %251 = vmatprep.subr.bf16.mxu0 0
    %252 = vmatpush2.bf16.msra.mxu0 0
    %253 = vmatprep.subr.bf16.mxu0 0
    %254 = vmatpush2.bf16.msra.mxu0 0
    %255 = vmatprep.subr.bf16.mxu0 0
    %256 = vmatpush2.bf16.msra.mxu0 0
    %257 = vmatprep.subr.bf16.mxu0 0
    %258 = vmatpush2.bf16.msra.mxu0 0
    %259 = vmatprep.subr.bf16.mxu0 0
    %260 = vmatpush2.bf16.msra.mxu0 0
    %261 = vmatprep.subr.bf16.mxu0 0
    %262 = vmatpush2.bf16.msra.mxu0 0
    %263 = vmatprep.mubr.bf16.mxu0 0
    %264 = vmatmul.mubr.bf16.gmra.mxu0 %v229
    %v265 = vpop.f32.mrf.mxu0
    %v266 = vadd.f32 %v214, %v265
    %v267 = vpop.f32.mrf.mxu0
    %v268 = vpop.f32.mrf.mxu0
    %v269 = vpop.f32.mrf.mxu0
    %270 = vdwg.mxu0
    %v271 = vmax.f32 %v266, 0.0
    %v272 = vadd.f32 %v271, %v201
    %v273 = vpack.c.bf16 %v272, %v272
    %s274 = scalar_lea.vmem [#allocation6], 32
    %v275 = vld [vmem:[%s274] sm:$0xf]
    %v276 = vld [vmem:[%s274 + $0x4] sm:$0xf]
    %v277 = vld [vmem:[%s274 + $0x8] sm:$0xf]
    %v278 = vld [vmem:[%s274 + $0xc] sm:$0xf]
    %s279 = scalar_lea.vmem %s4, 2
    %v280 = vld [vmem:[%s279] sm:$0x1]
    %v282 = vlaneseq
    %v283 = vshrl.u32 %v282, 7
    %v284 = vsub.s32 0, %v283
    %v285 = vrot.slane %v280, %v284
    %v291 = vunpack.c.l.b16 %v275
    %v292 = vunpack.c.l.b16 %v276
    %v293 = vunpack.c.l.b16 %v277
    %v294 = vunpack.c.l.b16 %v278
    %v295 = vpack.c.b16 %v292, %v291
    %v296 = vpack.c.b16 %v294, %v293
    %v300 = vsel %vm89, %v273, 0
    %302 = vmatprep.subr.bf16.mxu0 0
    %303 = vmatpush1.bf16.msra.mxu0 0
    %304 = vmatprep.subr.bf16.mxu0 0
    %305 = vmatpush1.bf16.msra.mxu0 0
    %306 = vmatprep.subr.bf16.mxu0 0
    %307 = vmatpush1.bf16.msra.mxu0 0
    %308 = vmatprep.subr.bf16.mxu0 0
    %309 = vmatpush1.bf16.msra.mxu0 0
    %310 = vmatprep.subr.bf16.mxu0 0
    %311 = vmatpush1.bf16.msra.mxu0 0
    %312 = vmatprep.subr.bf16.mxu0 0
    %313 = vmatpush1.bf16.msra.mxu0 0
    %314 = vmatprep.subr.bf16.mxu0 0
    %315 = vmatpush1.bf16.msra.mxu0 %v296
    %316 = vmatprep.subr.bf16.mxu0 0
    %317 = vmatpush1.bf16.msra.mxu0 %v295
    %318 = vmatprep.subr.bf16.mxu0 0
    %319 = vmatpush2.bf16.msra.mxu0 0
    %320 = vmatprep.subr.bf16.mxu0 0
    %321 = vmatpush2.bf16.msra.mxu0 0
    %322 = vmatprep.subr.bf16.mxu0 0
    %323 = vmatpush2.bf16.msra.mxu0 0
    %324 = vmatprep.subr.bf16.mxu0 0
    %325 = vmatpush2.bf16.msra.mxu0 0
    %326 = vmatprep.subr.bf16.mxu0 0
    %327 = vmatpush2.bf16.msra.mxu0 0
    %328 = vmatprep.subr.bf16.mxu0 0
    %329 = vmatpush2.bf16.msra.mxu0 0
    %330 = vmatprep.subr.bf16.mxu0 0
    %331 = vmatpush2.bf16.msra.mxu0 0
    %332 = vmatprep.subr.bf16.mxu0 0
    %333 = vmatpush2.bf16.msra.mxu0 0
    %334 = vmatprep.mubr.bf16.mxu0 0
    %335 = vmatmul.mubr.bf16.gmra.mxu0 %v300
    %v336 = vpop.f32.mrf.mxu0
    %v337 = vadd.f32 %v285, %v336
    %v338 = vpop.f32.mrf.mxu0
    %v339 = vpop.f32.mrf.mxu0
    %v340 = vpop.f32.mrf.mxu0
    %341 = vdwg.mxu0
    %v342 = vmax.f32 %v337, 0.0
    %v343 = vadd.f32 %v342, %v272
    %v344 = vpack.c.bf16 %v343, %v343
    %v345 = vld [vmem:[%s5] sm:$0xf]
    %v346 = vld [vmem:[%s5 + $0x4] sm:$0xf]
    %v347 = vld [vmem:[%s5 + $0x8] sm:$0xf]
    %v348 = vld [vmem:[%s5 + $0xc] sm:$0xf]
    %v349 = vld [vmem:[%s6] sm:$0x1]
    %v351 = vlaneseq
    %v352 = vshrl.u32 %v351, 7
    %v353 = vsub.s32 0, %v352
    %v354 = vrot.slane %v349, %v353
    %v360 = vunpack.c.l.b16 %v345
    %v361 = vunpack.c.l.b16 %v346
    %v362 = vunpack.c.l.b16 %v347
    %v363 = vunpack.c.l.b16 %v348
    %v364 = vpack.c.b16 %v361, %v360
    %v365 = vpack.c.b16 %v363, %v362
    %v369 = vsel %vm89, %v344, 0
    %371 = vmatprep.subr.bf16.mxu0 0
    %372 = vmatpush1.bf16.msra.mxu0 0
    %373 = vmatprep.subr.bf16.mxu0 0
    %374 = vmatpush1.bf16.msra.mxu0 0
    %375 = vmatprep.subr.bf16.mxu0 0
    %376 = vmatpush1.bf16.msra.mxu0 0
    %377 = vmatprep.subr.bf16.mxu0 0
    %378 = vmatpush1.bf16.msra.mxu0 0
    %379 = vmatprep.subr.bf16.mxu0 0
    %380 = vmatpush1.bf16.msra.mxu0 0
    %381 = vmatprep.subr.bf16.mxu0 0
    %382 = vmatpush1.bf16.msra.mxu0 0
    %383 = vmatprep.subr.bf16.mxu0 0
    %384 = vmatpush1.bf16.msra.mxu0 %v365
    %385 = vmatprep.subr.bf16.mxu0 0
    %386 = vmatpush1.bf16.msra.mxu0 %v364
    %387 = vmatprep.subr.bf16.mxu0 0
    %388 = vmatpush2.bf16.msra.mxu0 0
    %389 = vmatprep.subr.bf16.mxu0 0
    %390 = vmatpush2.bf16.msra.mxu0 0
    %391 = vmatprep.subr.bf16.mxu0 0
    %392 = vmatpush2.bf16.msra.mxu0 0
    %393 = vmatprep.subr.bf16.mxu0 0
    %394 = vmatpush2.bf16.msra.mxu0 0
    %395 = vmatprep.subr.bf16.mxu0 0
    %396 = vmatpush2.bf16.msra.mxu0 0
    %397 = vmatprep.subr.bf16.mxu0 0
    %398 = vmatpush2.bf16.msra.mxu0 0
    %399 = vmatprep.subr.bf16.mxu0 0
    %400 = vmatpush2.bf16.msra.mxu0 0
    %401 = vmatprep.subr.bf16.mxu0 0
    %402 = vmatpush2.bf16.msra.mxu0 0
    %403 = vmatprep.mubr.bf16.mxu0 0
    %404 = vmatmul.mubr.bf16.gmra.mxu0 %v369
    %v405 = vpop.f32.mrf.mxu0
    %v406 = vadd.f32 %v354, %v405
    %v407 = vpop.f32.mrf.mxu0
    %v408 = vpop.f32.mrf.mxu0
    %v409 = vpop.f32.mrf.mxu0
    %410 = vdwg.mxu0
    %v411 = vmax.f32 %v406, 0.0
    %vm412 = vcmask 31744
    %413 = vst.msk [vmem:[%s7] sm:$0xff] %vm412, %v411
    // Predicated region
    $region42: #{tpu_custom_call.1} parent=1 // pred_check
      _
    $region43: #{tpu_custom_call.1} parent=1 // pred_check_branch
      %415 = sbr.rel (0) target = $region45
    $region44: #{tpu_custom_call.1} parent=1 // pred_region
      _
    $region45: #{tpu_custom_call.1} parent=1 // pred_fallthru
      _
    // Predicated region
    $region46: #{tpu_custom_call.1} parent=1 // pred_check
      _
    $region47: #{tpu_custom_call.1} parent=1 // pred_check_branch
      %417 = sbr.rel (0) target = $region49
    $region48: #{tpu_custom_call.1} parent=1 // pred_region
      _
    $region49: #{tpu_custom_call.1} parent=1 // pred_fallthru
      _
    %418 = vsyncpa [#allocation3], 1
    %419 = vsyncpa [#allocation5], 1

</llo_original>
